<compile_context>
chip_gen: v7x
topology: tpu7x:2x2x1
jax: 0.10.0
libtpu: 0.0.40
codegen_flags: <defaults>
</compile_context>

<pallas_src>
import functools

import jax
import jax.numpy as jnp
from jax.experimental import pallas as pl
from jax.experimental.pallas import tpu as pltpu


def _round_up(x, m):
    return (x + m - 1) // m * m


def _choose_tb(B):
    """Batch tile: multiple of 8, <= 512, small enough that the grid has >= 2
    steps when B >= 16 (so v7x's two TensorCores get work and input DMAs
    pipeline behind compute), while keeping batch padding under ~30%."""
    cap = min(512, max(8, B // 2))
    for cand in (512, 256, 128, 64, 32, 16, 8):
        if cand > cap:
            continue
        if cand == 8 or _round_up(B, cand) <= int(1.3 * B):
            return cand
    return 8


def _vmem_cap_bytes():
    """Generation-aware VMEM ceiling with headroom for compiler scratch."""
    try:
        cap = pltpu.get_tpu_info().vmem_capacity_bytes
    except Exception:
        return 64 * 1024 * 1024            # unknown backend (e.g. interpret): conservative
    if cap <= 64 * 1024 * 1024:            # v7x: 64 MiB per TensorCore
        return 52 * 1024 * 1024
    return int(cap * 0.85)                 # v5e / v6e: ~108 of 128 MiB


# ------------------------------- kernel --------------------------------------
def gain_disc_kernel(hint_rate, d, use_concat,
                     x_ref, u_ref, m_ref,
                     w1_ref, b1_ref, w2_ref, b2_ref, w3_ref, b3_ref,
                     out_ref):
    # hint = mask * (U(0,1) < hint_rate); the uniform draw u is an input,
    # the compare + mask multiply are fused here (VPU, free under the MXU work).
    hint = jnp.where(u_ref[...] < hint_rate, m_ref[...], 0.0)

    x16 = x_ref[...].astype(jnp.bfloat16)
    h16 = hint.astype(jnp.bfloat16)

    # concat([x_hat, hint], 1) @ W1:
    #   - one MXU pass over K = 2D when D is lane-aligned (in-VMEM lane concat)
    #   - otherwise the identical split form; either way no [B, 2D] HBM array.
    if use_concat:
        inp16 = jnp.concatenate([x16, h16], axis=-1)
        h1 = jnp.dot(inp16, w1_ref[...], preferred_element_type=jnp.float32)
    else:
        h1 = (jnp.dot(x16, w1_ref[:d, :], preferred_element_type=jnp.float32)
              + jnp.dot(h16, w1_ref[d:, :], preferred_element_type=jnp.float32))
    h1 = jnp.maximum(h1 + b1_ref[...], 0.0)                       # ReLU (f32)

    h2 = jnp.dot(h1.astype(jnp.bfloat16), w2_ref[...],
                 preferred_element_type=jnp.float32) + b2_ref[...]
    h2 = jnp.maximum(h2, 0.0)                                     # ReLU

    h3 = jnp.dot(h2.astype(jnp.bfloat16), w3_ref[...],
                 preferred_element_type=jnp.float32) + b3_ref[...]

    # Store the unpadded [tb, D] result directly (no post-kernel slicing pass).
    logits = h3 if h3.shape[1] == d else h3[:, :d]
    out_ref[...] = jax.nn.sigmoid(logits).astype(out_ref.dtype)


# ------------------------------- wrapper --------------------------------------
def gain_discriminator_forward(x_hat, mask, u, prepared, hint_rate, *, tb=None):
    """x_hat, mask, u: [B, D] f32. prepared: padded/bf16 weights. Returns [B, D] f32."""
    w1, b1, w2, b2, w3, b3 = prepared
    B, D = x_hat.shape
    Dp = w2.shape[0]                       # feature dim padded to a 128-lane multiple
    use_concat = (D % 128 == 0)

    if tb is None:
        tb = _choose_tb(B)
    Bp = _round_up(B, tb)
    if Bp != B:                            # pad awkward batches instead of tiny tiles
        pad = ((0, Bp - B), (0, 0))
        x_hat, mask, u = jnp.pad(x_hat, pad), jnp.pad(mask, pad), jnp.pad(u, pad)

    grid = (Bp // tb,)
    tile = lambda i: (i, 0)                            # batch-tiled arrays
    const = lambda i: (0, 0)                           # weights/biases: same block every step
    # constant operands -> single buffer (double-buffering them buys nothing)
    wspec = lambda shape: pl.BlockSpec(shape, const, pipeline_mode=pl.Buffered(1))

    flops = 2 * Bp * (2 * D) * Dp + 2 * 2 * Bp * Dp * Dp
    bytes_accessed = (3 * Bp * D * 4                          # x_hat, u, mask (f32)
                      + (2 * D * Dp + 2 * Dp * Dp) * 2        # bf16 weights
                      + 3 * Dp * 4                            # f32 biases
                      + Bp * D * 4)                           # output
    cost = pl.CostEstimate(flops=flops, transcendentals=Bp * Dp,
                           bytes_accessed=bytes_accessed)

    # VMEM: batch tiles double-buffered, weights single-buffered.
    vmem_est = (2 * 3 * tb * D * 4                            # x/u/mask tiles
                + 2 * tb * D * 4                              # out tile
                + (2 * D * Dp + 2 * Dp * Dp) * 2 + 3 * Dp * 4 # weights + biases (x1)
                + 8 * tb * Dp * 4)                            # live f32 intermediates
    cap = _vmem_cap_bytes()
    if vmem_est > cap:
        # TODO(synk): K/Dp grid tiling (inner "arbitrary" axis, pl.when-init
        # accumulator) so W2/W3 stream for large D instead of failing here.
        raise NotImplementedError(
            f"single-block weights need ~{vmem_est} B VMEM > cap {cap} B")
    vmem_limit = int(min(cap, max(2 * vmem_est, 32 * 1024 * 1024)))

    out = pl.pallas_call(
        functools.partial(gain_disc_kernel, float(hint_rate), D, use_concat),
        out_shape=jax.ShapeDtypeStruct((Bp, D), jnp.float32),
        grid=grid,
        in_specs=[
            pl.BlockSpec((tb, D), tile),     # x_hat tile
            pl.BlockSpec((tb, D), tile),     # uniform randoms tile
            pl.BlockSpec((tb, D), tile),     # mask tile
            wspec((2 * D, Dp)),              # W1 ([x_hat; hint] -> h1)
            wspec((1, Dp)),                  # b1
            wspec((Dp, Dp)),                 # W2
            wspec((1, Dp)),                  # b2
            wspec((Dp, Dp)),                 # W3
            wspec((1, Dp)),                  # b3
        ],
        out_specs=pl.BlockSpec((tb, D), tile),
        compiler_params=pltpu.CompilerParams(
            dimension_semantics=("parallel",),
            vmem_limit_bytes=vmem_limit),
        cost_estimate=cost,
    )(x_hat, u, mask, w1, b1, w2, b2, w3, b3)

    return out if Bp == B else out[:B]       # row slice only when batch was padded


def gain_discriminator(x_hat, mask, prepared, hint_rate, key, *, tb=None):
    """Module-equivalent forward: sample the uniform hint noise from `key`
    (jax.random — no in-kernel PRNG, works under interpret too) and run the
    fused hint + 3-layer-MLP kernel. Returns the [B, D] discriminator output."""
    u = jax.random.uniform(key, x_hat.shape, dtype=jnp.float32)
    return gain_discriminator_forward(x_hat, mask, u, prepared, hint_rate, tb=tb)


# ------------------------------ parameters ------------------------------------
def xavier_normal(key, fan_in, fan_out):
    std = (2.0 / (fan_in + fan_out)) ** 0.5
    # stored [in, out] (transpose of torch's [out, in]) so the kernel does x @ W
    return std * jax.random.normal(key, (fan_in, fan_out), dtype=jnp.float32)


def init_params(key, dim):
    """Logical f32 parameters, matching the PyTorch module's init."""
    k1, k2, k3 = jax.random.split(key, 3)
    zeros = lambda: jnp.zeros((1, dim), jnp.float32)
    return (xavier_normal(k1, 2 * dim, dim), zeros(),
            xavier_normal(k2, dim, dim), zeros(),
            xavier_normal(k3, dim, dim), zeros())


def prepare_params(params, dim):
    """One-time prep: zero-pad the feature dim to a 128-lane multiple and cast
    weights to bf16 (MXU accumulates in f32 in-kernel); biases stay f32.
    NOTE: bf16 weights are a perf choice and deviate slightly from f32 nn.Linear."""
    w1, b1, w2, b2, w3, b3 = params
    dp = _round_up(dim, 128)

    def pad(a, rows, cols):
        return jnp.zeros((rows, cols), jnp.float32).at[:a.shape[0], :a.shape[1]].set(a)

    # TODO(synk): fp8 weights on v7x / int8 + per-channel scales on v6e.
    return (pad(w1, 2 * dim, dp).astype(jnp.bfloat16),
            pad(b1, 1, dp),
            pad(w2, dp, dp).astype(jnp.bfloat16),
            pad(b2, 1, dp),
            pad(w3, dp, dp).astype(jnp.bfloat16),
            pad(b3, 1, dp))


# ------------------------------ reference -------------------------------------
def reference_forward(x_hat, hint, params):
    """Pure-JAX reference with the kernel's numerics (bf16 matmuls, f32 accumulate)."""
    w1, b1, w2, b2, w3, b3 = params

    def lin(x, w, b):
        return jnp.dot(x.astype(jnp.bfloat16), w.astype(jnp.bfloat16),
                       preferred_element_type=jnp.float32) + b

    inp = jnp.concatenate([x_hat, hint], axis=1)
    h1 = jax.nn.relu(lin(inp, w1, b1))
    h2 = jax.nn.relu(lin(h1, w2, b2))
    return jax.nn.sigmoid(lin(h2, w3, b3))


if __name__ == "__main__":
    B, D = 16, 32            # batch=16, feature dim (h_dim)=32
    hint_rate = 0.9

    root = jax.random.PRNGKey(0)
    k_params, k_x, k_mask, k_hint = jax.random.split(root, 4)

    params = init_params(k_params, D)        # logical f32 params
    prepared = prepare_params(params, D)     # padded / bf16 (done once)

    x_hat = jax.random.normal(k_x, (B, D), dtype=jnp.float32)
    mask = (jax.random.uniform(k_mask, (B, D)) < 0.5).astype(jnp.float32)

    out = gain_discriminator(x_hat, mask, prepared, hint_rate, k_hint)
    out = jax.block_until_ready(out)

    assert out.shape == (B, D), out.shape
    assert bool(jnp.all(jnp.isfinite(out)))
    assert bool(jnp.all((out > 0.0) & (out < 1.0)))      # sigmoid range

    # Reproduce the exact hint the kernel path used (same key -> same uniforms).
    u = jax.random.uniform(k_hint, (B, D), dtype=jnp.float32)
    hint = mask * (u < hint_rate).astype(jnp.float32)
    assert bool(jnp.all((hint == 0.0) | (hint == 1.0)))
    assert bool(jnp.all(hint <= mask))

    ref = reference_forward(x_hat, hint, params)
    err = float(jnp.max(jnp.abs(out - ref)))
    assert err < 1e-2, err

    print("KERNEL_OK")
</pallas_src>

<mosaic_0001>
module attributes {stable_mosaic.version = 11 : i64} {
  func.func @gain_disc_kernel(%arg0: i32, %arg1: memref<8x32xf32, #tpu.memory_space<vmem>>, %arg2: memref<8x32xf32, #tpu.memory_space<vmem>>, %arg3: memref<8x32xf32, #tpu.memory_space<vmem>>, %arg4: memref<64x128xbf16, #tpu.memory_space<vmem>>, %arg5: memref<1x128xf32, #tpu.memory_space<vmem>>, %arg6: memref<128x128xbf16, #tpu.memory_space<vmem>>, %arg7: memref<1x128xf32, #tpu.memory_space<vmem>>, %arg8: memref<128x128xbf16, #tpu.memory_space<vmem>>, %arg9: memref<1x128xf32, #tpu.memory_space<vmem>>, %arg10: memref<8x32xf32, #tpu.memory_space<vmem>>) attributes {dimension_semantics = [#tpu.dimension_semantics<parallel>], iteration_bounds = array<i64: 2>, scalar_prefetch = 0 : i64, scratch_operands = 0 : i64, tpu.core_type = #tpu.core_type<tc>, window_params = [{transform_indices = @transform_0, window_bounds = array<i64: 8, 32>}, {transform_indices = @transform_1, window_bounds = array<i64: 8, 32>}, {transform_indices = @transform_2, window_bounds = array<i64: 8, 32>}, {pipeline_mode = #tpu.pipeline_mode<synchronous>, transform_indices = @transform_3, window_bounds = array<i64: 64, 128>}, {pipeline_mode = #tpu.pipeline_mode<synchronous>, transform_indices = @transform_4, window_bounds = array<i64: 1, 128>}, {pipeline_mode = #tpu.pipeline_mode<synchronous>, transform_indices = @transform_5, window_bounds = array<i64: 128, 128>}, {pipeline_mode = #tpu.pipeline_mode<synchronous>, transform_indices = @transform_6, window_bounds = array<i64: 1, 128>}, {pipeline_mode = #tpu.pipeline_mode<synchronous>, transform_indices = @transform_7, window_bounds = array<i64: 128, 128>}, {pipeline_mode = #tpu.pipeline_mode<synchronous>, transform_indices = @transform_8, window_bounds = array<i64: 1, 128>}, {transform_indices = @transform_9, window_bounds = array<i64: 8, 32>}]} {
    %c0 = arith.constant 0 : index
    %c0_0 = arith.constant 0 : index
    %0 = vector.load %arg2[%c0, %c0_0] : memref<8x32xf32, #tpu.memory_space<vmem>>, vector<8x32xf32>
    %cst = arith.constant 0.899999976 : f32
    %1 = vector.broadcast %cst : f32 to vector<8x32xf32>
    %2 = arith.cmpf olt, %0, %1 : vector<8x32xf32>
    %c0_1 = arith.constant 0 : index
    %c0_2 = arith.constant 0 : index
    %3 = vector.load %arg3[%c0_1, %c0_2] : memref<8x32xf32, #tpu.memory_space<vmem>>, vector<8x32xf32>
    %cst_3 = arith.constant 0.000000e+00 : f32
    %4 = vector.broadcast %cst_3 : f32 to vector<8x32xf32>
    %5 = arith.select %2, %3, %4 : vector<8x32xi1>, vector<8x32xf32>
    %c0_4 = arith.constant 0 : index
    %c0_5 = arith.constant 0 : index
    %6 = vector.load %arg1[%c0_4, %c0_5] : memref<8x32xf32, #tpu.memory_space<vmem>>, vector<8x32xf32>
    %7 = arith.truncf %6 : vector<8x32xf32> to vector<8x32xbf16>
    %8 = arith.truncf %5 : vector<8x32xf32> to vector<8x32xbf16>
    %c0_6 = arith.constant 0 : index
    %c0_7 = arith.constant 0 : index
    %9 = vector.load %arg4[%c0_6, %c0_7] : memref<64x128xbf16, #tpu.memory_space<vmem>>, vector<32x128xbf16>
    %cst_8 = arith.constant dense<0.000000e+00> : vector<8x128xf32>
    %10 = tpu.matmul %7, %9, %cst_8 {dimension_numbers = #tpu.dot_dimension_numbers<[1], [0], [0], [1], [0, 0, 1, 1], [], []>} : vector<8x32xbf16>, vector<32x128xbf16>, vector<8x128xf32> -> vector<8x128xf32>
    %c32 = arith.constant 32 : index
    %c0_9 = arith.constant 0 : index
    %11 = vector.load %arg4[%c32, %c0_9] : memref<64x128xbf16, #tpu.memory_space<vmem>>, vector<32x128xbf16>
    %cst_10 = arith.constant dense<0.000000e+00> : vector<8x128xf32>
    %12 = tpu.matmul %8, %11, %cst_10 {dimension_numbers = #tpu.dot_dimension_numbers<[1], [0], [0], [1], [0, 0, 1, 1], [], []>} : vector<8x32xbf16>, vector<32x128xbf16>, vector<8x128xf32> -> vector<8x128xf32>
    %13 = arith.addf %10, %12 : vector<8x128xf32>
    %c0_11 = arith.constant 0 : index
    %c0_12 = arith.constant 0 : index
    %14 = vector.load %arg5[%c0_11, %c0_12] : memref<1x128xf32, #tpu.memory_space<vmem>>, vector<1x128xf32>
    %15 = vector.broadcast %14 : vector<1x128xf32> to vector<8x128xf32>
    %16 = arith.addf %13, %15 : vector<8x128xf32>
    %cst_13 = arith.constant 0.000000e+00 : f32
    %17 = vector.broadcast %cst_13 : f32 to vector<8x128xf32>
    %18 = arith.maximumf %16, %17 : vector<8x128xf32>
    %19 = arith.truncf %18 : vector<8x128xf32> to vector<8x128xbf16>
    %c0_14 = arith.constant 0 : index
    %c0_15 = arith.constant 0 : index
    %20 = vector.load %arg6[%c0_14, %c0_15] : memref<128x128xbf16, #tpu.memory_space<vmem>>, vector<128x128xbf16>
    %cst_16 = arith.constant dense<0.000000e+00> : vector<8x128xf32>
    %21 = tpu.matmul %19, %20, %cst_16 {dimension_numbers = #tpu.dot_dimension_numbers<[1], [0], [0], [1], [0, 0, 1, 1], [], []>} : vector<8x128xbf16>, vector<128x128xbf16>, vector<8x128xf32> -> vector<8x128xf32>
    %c0_17 = arith.constant 0 : index
    %c0_18 = arith.constant 0 : index
    %22 = vector.load %arg7[%c0_17, %c0_18] : memref<1x128xf32, #tpu.memory_space<vmem>>, vector<1x128xf32>
    %23 = vector.broadcast %22 : vector<1x128xf32> to vector<8x128xf32>
    %24 = arith.addf %21, %23 : vector<8x128xf32>
    %cst_19 = arith.constant 0.000000e+00 : f32
    %25 = vector.broadcast %cst_19 : f32 to vector<8x128xf32>
    %26 = arith.maximumf %24, %25 : vector<8x128xf32>
    %27 = arith.truncf %26 : vector<8x128xf32> to vector<8x128xbf16>
    %c0_20 = arith.constant 0 : index
    %c0_21 = arith.constant 0 : index
    %28 = vector.load %arg8[%c0_20, %c0_21] : memref<128x128xbf16, #tpu.memory_space<vmem>>, vector<128x128xbf16>
    %cst_22 = arith.constant dense<0.000000e+00> : vector<8x128xf32>
    %29 = tpu.matmul %27, %28, %cst_22 {dimension_numbers = #tpu.dot_dimension_numbers<[1], [0], [0], [1], [0, 0, 1, 1], [], []>} : vector<8x128xbf16>, vector<128x128xbf16>, vector<8x128xf32> -> vector<8x128xf32>
    %c0_23 = arith.constant 0 : index
    %c0_24 = arith.constant 0 : index
    %30 = vector.load %arg9[%c0_23, %c0_24] : memref<1x128xf32, #tpu.memory_space<vmem>>, vector<1x128xf32>
    %31 = vector.broadcast %30 : vector<1x128xf32> to vector<8x128xf32>
    %32 = arith.addf %29, %31 : vector<8x128xf32>
    %33 = vector.extract_strided_slice %32 {offsets = [0, 0], sizes = [8, 32], strides = [1, 1]} : vector<8x128xf32> to vector<8x32xf32>
    %34 = arith.negf %33 : vector<8x32xf32>
    %35 = math.exp %34 : vector<8x32xf32>
    %cst_25 = arith.constant 1.000000e+00 : f32
    %36 = vector.broadcast %cst_25 : f32 to vector<8x32xf32>
    %37 = arith.addf %36, %35 : vector<8x32xf32>
    %38 = arith.divf %36, %37 : vector<8x32xf32>
    %c0_26 = arith.constant 0 : index
    %c0_27 = arith.constant 0 : index
    %39 = vector.load %arg10[%c0_26, %c0_27] : memref<8x32xf32, #tpu.memory_space<vmem>>, vector<8x32xf32>
    tpu.vector_store %arg10[%c0_26, %c0_27], %38 {strides = array<i32>} : memref<8x32xf32, #tpu.memory_space<vmem>>, vector<8x32xf32>,
    return
  }
  func.func @transform_0(%arg0: i32) -> (i32, i32) {
    %c0_i32 = arith.constant 0 : i32
    %c0_i32_0 = arith.constant 0 : i32
    return %arg0, %c0_i32 : i32, i32
  }
  func.func @transform_1(%arg0: i32) -> (i32, i32) {
    %c0_i32 = arith.constant 0 : i32
    %c0_i32_0 = arith.constant 0 : i32
    return %arg0, %c0_i32 : i32, i32
  }
  func.func @transform_2(%arg0: i32) -> (i32, i32) {
    %c0_i32 = arith.constant 0 : i32
    %c0_i32_0 = arith.constant 0 : i32
    return %arg0, %c0_i32 : i32, i32
  }
  func.func @transform_3(%arg0: i32) -> (i32, i32) {
    %c0_i32 = arith.constant 0 : i32
    %c0_i32_0 = arith.constant 0 : i32
    %c0_i32_1 = arith.constant 0 : i32
    return %c0_i32, %c0_i32_0 : i32, i32
  }
  func.func @transform_4(%arg0: i32) -> (i32, i32) {
    %c0_i32 = arith.constant 0 : i32
    %c0_i32_0 = arith.constant 0 : i32
    %c0_i32_1 = arith.constant 0 : i32
    return %c0_i32, %c0_i32_0 : i32, i32
  }
  func.func @transform_5(%arg0: i32) -> (i32, i32) {
    %c0_i32 = arith.constant 0 : i32
    %c0_i32_0 = arith.constant 0 : i32
    %c0_i32_1 = arith.constant 0 : i32
    return %c0_i32, %c0_i32_0 : i32, i32
  }
  func.func @transform_6(%arg0: i32) -> (i32, i32) {
    %c0_i32 = arith.constant 0 : i32
    %c0_i32_0 = arith.constant 0 : i32
    %c0_i32_1 = arith.constant 0 : i32
    return %c0_i32, %c0_i32_0 : i32, i32
  }
  func.func @transform_7(%arg0: i32) -> (i32, i32) {
    %c0_i32 = arith.constant 0 : i32
    %c0_i32_0 = arith.constant 0 : i32
    %c0_i32_1 = arith.constant 0 : i32
    return %c0_i32, %c0_i32_0 : i32, i32
  }
  func.func @transform_8(%arg0: i32) -> (i32, i32) {
    %c0_i32 = arith.constant 0 : i32
    %c0_i32_0 = arith.constant 0 : i32
    %c0_i32_1 = arith.constant 0 : i32
    return %c0_i32, %c0_i32_0 : i32, i32
  }
  func.func @transform_9(%arg0: i32) -> (i32, i32) {
    %c0_i32 = arith.constant 0 : i32
    %c0_i32_0 = arith.constant 0 : i32
    return %arg0, %c0_i32 : i32, i32
  }
}

</mosaic_0001>

<llo_original>
// kernel: tpu_custom_call.1
$region0: #{tpu_custom_call.1}
  #allocation0 [shape = 'u32[]', space=smem, size = 0x4, offset = 0x4, fixed_abs, tag = 'smem constant byte address 0x4 - core index']
  #allocation1 [shape = 'u32[144,128]{1,0:T(1,128)}', space=vmem, size = 0x12000, scoped, tag = 'internal scratch']
  %s0 = inlined_call_operand.hbm [shape: f32[16,32], index: 0, kind: input, shape index: {}]
  %s1 = inlined_call_operand.hbm [shape: f32[16,32], index: 1, kind: input, shape index: {}]
  %s2 = inlined_call_operand.hbm [shape: f32[16,32], index: 2, kind: input, shape index: {}]
  %s3 = inlined_call_operand.hbm [shape: bf16[64,128], index: 3, kind: input, shape index: {}]
  %s4 = inlined_call_operand.vmem [shape: f32[1,128], index: 4, kind: input, shape index: {}]
  %s5 = inlined_call_operand.hbm [shape: bf16[128,128], index: 5, kind: input, shape index: {}]
  %s6 = inlined_call_operand.vmem [shape: f32[1,128], index: 6, kind: input, shape index: {}]
  %s7 = inlined_call_operand.hbm [shape: bf16[128,128], index: 7, kind: input, shape index: {}]
  %s8 = inlined_call_operand.vmem [shape: f32[1,128], index: 8, kind: input, shape index: {}]
  %s9 = inlined_call_operand.hbm [shape: f32[16,32], index: 9, kind: output, shape index: {}]
  %s10 = sld [smem:[#allocation0]]
  $region93: #{tpu_custom_call.1} parent=0
    _
  %s12 = ssub.s32 1, %s10
  %s13 = scalar_select 0, %s12, %s10
  $region1: #{tpu_custom_call.1} parent=0
    #allocation2 [shape = 'u8[8192]{0}', space=vmem, size = 0x2000, scoped, tag = 'input window, operand 0']
    #allocation3 [shape = 's32[2]{0}', space=sflag, size = 0x8, scoped, tag = 'scoped memory for tpu_custom_call.1']
    #allocation4 [shape = 's32[2]{0}', space=sflag, size = 0x8, scoped, tag = 'scoped memory for tpu_custom_call.1']
    #allocation5 [shape = 'u8[8192]{0}', space=vmem, size = 0x2000, scoped, tag = 'input window, operand 1']
    #allocation6 [shape = 's32[2]{0}', space=sflag, size = 0x8, scoped, tag = 'scoped memory for tpu_custom_call.1']
    #allocation7 [shape = 'u8[8192]{0}', space=vmem, size = 0x2000, scoped, tag = 'input window, operand 2']
    #allocation8 [shape = 'u8[16384]{0}', space=vmem, size = 0x4000, scoped, tag = 'input window, operand 3, single buffered']
    #allocation9 [shape = 's32[1]{0}', space=sflag, size = 0x4, scoped, tag = 'scoped memory for tpu_custom_call.1']
    #allocation10 [shape = 'u8[32768]{0}', space=vmem, size = 0x8000, scoped, tag = 'input window, operand 5, single buffered']
    #allocation11 [shape = 'u8[32768]{0}', space=vmem, size = 0x8000, scoped, tag = 'input window, operand 7, single buffered']
    #allocation12 [shape = 's32[1]{0}', space=sflag, size = 0x4, scoped, tag = 'scoped memory for tpu_custom_call.1']
    #allocation13 [shape = 'u8[8192]{0}', space=vmem, size = 0x2000, scoped, tag = 'output window, operand 0']
    %14 = vsyncpa [#allocation3], 0
    %s15 = scalar_lea.sflag [#allocation3], 1
    %16 = vsyncpa %s15, 0
    %17 = vsyncpa [#allocation6], 0
    %s18 = scalar_lea.sflag [#allocation6], 1
    %19 = vsyncpa %s18, 0
    %20 = vsyncpa [#allocation9], 0
    %21 = vsyncpa [#allocation12], 0
    %22 = vsyncpa [#allocation4], 0
    %s23 = scalar_lea.sflag [#allocation4], 1
    %24 = vsyncpa %s23, 0
    loop: start=0, step=1, limit=4
    $region2: #{tpu_custom_call.1} parent=1 // loop_pre_header
      _
    $region3: #{tpu_custom_call.1} parent=1 // loop_header
      %s26 = sphi 0, %s30
      %p27 = scmp.ge.s32.totalorder %s26, 4
      %s36 = sphi 0, %s38
      %s39 = sphi 0, %s36
      %s40 = sphi 0, %s39
      %s56 = sphi 0, %s40
      %s62 = sphi 0, %s64
      %s65 = sphi 0, %s62
      %s66 = sphi 0, %s65
      %s82 = sphi 0, %s66
      %s88 = sphi 0, %s90
      %s91 = sphi 0, %s88
      %s92 = sphi 0, %s91
      %s108 = sphi 0, %s92
      %s112 = sphi 0, %s112
      %s114 = sphi 0, %s112
      %s115 = sphi 0, %s114
      %s129 = sphi 0, %s115
      %s133 = sphi 0, %s133
      %s135 = sphi 0, %s133
      %s136 = sphi 0, %s135
      %s150 = sphi 0, %s136
      %s154 = sphi 0, %s154
      %s156 = sphi 0, %s154
      %s157 = sphi 0, %s156
      %s171 = sphi 0, %s157
      %s175 = sphi 0, %s175
      %s177 = sphi 0, %s175
      %s178 = sphi 0, %s177
      %s192 = sphi 0, %s178
      %s196 = sphi 0, %s196
      %s198 = sphi 0, %s196
      %s199 = sphi 0, %s198
      %s213 = sphi 0, %s199
      %s217 = sphi 0, %s217
      %s219 = sphi 0, %s217
      %s220 = sphi 0, %s219
      %s234 = sphi 0, %s220
      %s240 = sphi 0, %s242
      %s243 = sphi 0, %s240
      %s244 = sphi 0, %s243
      %s260 = sphi 0, %s244
    $region4: #{tpu_custom_call.1} parent=1 // loop_header_branch
      %29 = sbr.rel (%p27) target = $region8
    $region5: #{tpu_custom_call.1} parent=1 // loop_body
      %s31 = ssub.s32 %s26, 1
      %s32 = ssub.s32 %s26, 2
      %s33 = sadd.s32 %s26, 1
      %s34 = ssub.s32 %s26, %s33
      %p35 = scmp.eq.s32.totalorder %s34, 0
      %s37 = sadd.s32 %s36, 1
      %s38 = scalar_select %p35, %s36, %s37
      %p41 = pneg %p35
      %p42 = scmp.eq.s32.totalorder %s26, 1
      %p43 = por %p41, %p42
      %p44 = scmp.ne.s32.totalorder %s36, %s39
      %p45 = scmp.eq.s32.totalorder %s26, 0
      %p46 = por %p44, %p45
      %p47 = scmp.ne.s32.totalorder %s36, %s39
      %p48 = scmp.eq.s32.totalorder %s31, 1
      %p49 = por %p47, %p48
      %p50 = scmp.ne.s32.totalorder %s39, %s40
      %p51 = scmp.eq.s32.totalorder %s31, 0
      %p52 = por %p50, %p51
      %p53 = scmp.ne.s32.totalorder %s39, %s40
      %p54 = scmp.eq.s32.totalorder %s32, 1
      %p55 = por %p53, %p54
      %p57 = scmp.ne.s32.totalorder %s40, %s56
      %p58 = scmp.eq.s32.totalorder %s32, 0
      %p59 = por %p57, %p58
      %s60 = ssub.s32 %s26, %s33
      %p61 = scmp.eq.s32.totalorder %s60, 0
      %s63 = sadd.s32 %s62, 1
      %s64 = scalar_select %p61, %s62, %s63
      %p67 = pneg %p61
      %p68 = scmp.eq.s32.totalorder %s26, 1
      %p69 = por %p67, %p68
      %p70 = scmp.ne.s32.totalorder %s62, %s65
      %p71 = scmp.eq.s32.totalorder %s26, 0
      %p72 = por %p70, %p71
      %p73 = scmp.ne.s32.totalorder %s62, %s65
      %p74 = scmp.eq.s32.totalorder %s31, 1
      %p75 = por %p73, %p74
      %p76 = scmp.ne.s32.totalorder %s65, %s66
      %p77 = scmp.eq.s32.totalorder %s31, 0
      %p78 = por %p76, %p77
      %p79 = scmp.ne.s32.totalorder %s65, %s66
      %p80 = scmp.eq.s32.totalorder %s32, 1
      %p81 = por %p79, %p80
      %p83 = scmp.ne.s32.totalorder %s66, %s82
      %p84 = scmp.eq.s32.totalorder %s32, 0
      %p85 = por %p83, %p84
      %s86 = ssub.s32 %s26, %s33
      %p87 = scmp.eq.s32.totalorder %s86, 0
      %s89 = sadd.s32 %s88, 1
      %s90 = scalar_select %p87, %s88, %s89
      %p93 = pneg %p87
      %p94 = scmp.eq.s32.totalorder %s26, 1
      %p95 = por %p93, %p94
      %p96 = scmp.ne.s32.totalorder %s88, %s91
      %p97 = scmp.eq.s32.totalorder %s26, 0
      %p98 = por %p96, %p97
      %p99 = scmp.ne.s32.totalorder %s88, %s91
      %p100 = scmp.eq.s32.totalorder %s31, 1
      %p101 = por %p99, %p100
      %p102 = scmp.ne.s32.totalorder %s91, %s92
      %p103 = scmp.eq.s32.totalorder %s31, 0
      %p104 = por %p102, %p103
      %p105 = scmp.ne.s32.totalorder %s91, %s92
      %p106 = scmp.eq.s32.totalorder %s32, 1
      %p107 = por %p105, %p106
      %p109 = scmp.ne.s32.totalorder %s92, %s108
      %p110 = scmp.eq.s32.totalorder %s32, 0
      %p111 = por %p109, %p110
      %s113 = sadd.s32 %s112, 1
      %p116 = scmp.eq.s32.totalorder %s26, 1
      %p117 = scmp.ne.s32.totalorder %s112, %s114
      %p118 = scmp.eq.s32.totalorder %s26, 0
      %p119 = por %p117, %p118
      %p120 = scmp.ne.s32.totalorder %s112, %s114
      %p121 = scmp.eq.s32.totalorder %s31, 1
      %p122 = por %p120, %p121
      %p123 = scmp.ne.s32.totalorder %s114, %s115
      %p124 = scmp.eq.s32.totalorder %s31, 0
      %p125 = por %p123, %p124
      %p126 = scmp.ne.s32.totalorder %s114, %s115
      %p127 = scmp.eq.s32.totalorder %s32, 1
      %p128 = por %p126, %p127
      %p130 = scmp.ne.s32.totalorder %s115, %s129
      %p131 = scmp.eq.s32.totalorder %s32, 0
      %p132 = por %p130, %p131
      %s134 = sadd.s32 %s133, 1
      %p137 = scmp.eq.s32.totalorder %s26, 1
      %p138 = scmp.ne.s32.totalorder %s133, %s135
      %p139 = scmp.eq.s32.totalorder %s26, 0
      %p140 = por %p138, %p139
      %p141 = scmp.ne.s32.totalorder %s133, %s135
      %p142 = scmp.eq.s32.totalorder %s31, 1
      %p143 = por %p141, %p142
      %p144 = scmp.ne.s32.totalorder %s135, %s136
      %p145 = scmp.eq.s32.totalorder %s31, 0
      %p146 = por %p144, %p145
      %p147 = scmp.ne.s32.totalorder %s135, %s136
      %p148 = scmp.eq.s32.totalorder %s32, 1
      %p149 = por %p147, %p148
      %p151 = scmp.ne.s32.totalorder %s136, %s150
      %p152 = scmp.eq.s32.totalorder %s32, 0
      %p153 = por %p151, %p152
      %s155 = sadd.s32 %s154, 1
      %p158 = scmp.eq.s32.totalorder %s26, 1
      %p159 = scmp.ne.s32.totalorder %s154, %s156
      %p160 = scmp.eq.s32.totalorder %s26, 0
      %p161 = por %p159, %p160
      %p162 = scmp.ne.s32.totalorder %s154, %s156
      %p163 = scmp.eq.s32.totalorder %s31, 1
      %p164 = por %p162, %p163
      %p165 = scmp.ne.s32.totalorder %s156, %s157
      %p166 = scmp.eq.s32.totalorder %s31, 0
      %p167 = por %p165, %p166
      %p168 = scmp.ne.s32.totalorder %s156, %s157
      %p169 = scmp.eq.s32.totalorder %s32, 1
      %p170 = por %p168, %p169
      %p172 = scmp.ne.s32.totalorder %s157, %s171
      %p173 = scmp.eq.s32.totalorder %s32, 0
      %p174 = por %p172, %p173
      %s176 = sadd.s32 %s175, 1
      %p179 = scmp.eq.s32.totalorder %s26, 1
      %p180 = scmp.ne.s32.totalorder %s175, %s177
      %p181 = scmp.eq.s32.totalorder %s26, 0
      %p182 = por %p180, %p181
      %p183 = scmp.ne.s32.totalorder %s175, %s177
      %p184 = scmp.eq.s32.totalorder %s31, 1
      %p185 = por %p183, %p184
      %p186 = scmp.ne.s32.totalorder %s177, %s178
      %p187 = scmp.eq.s32.totalorder %s31, 0
      %p188 = por %p186, %p187
      %p189 = scmp.ne.s32.totalorder %s177, %s178
      %p190 = scmp.eq.s32.totalorder %s32, 1
      %p191 = por %p189, %p190
      %p193 = scmp.ne.s32.totalorder %s178, %s192
      %p194 = scmp.eq.s32.totalorder %s32, 0
      %p195 = por %p193, %p194
      %s197 = sadd.s32 %s196, 1
      %p200 = scmp.eq.s32.totalorder %s26, 1
      %p201 = scmp.ne.s32.totalorder %s196, %s198
      %p202 = scmp.eq.s32.totalorder %s26, 0
      %p203 = por %p201, %p202
      %p204 = scmp.ne.s32.totalorder %s196, %s198
      %p205 = scmp.eq.s32.totalorder %s31, 1
      %p206 = por %p204, %p205
      %p207 = scmp.ne.s32.totalorder %s198, %s199
      %p208 = scmp.eq.s32.totalorder %s31, 0
      %p209 = por %p207, %p208
      %p210 = scmp.ne.s32.totalorder %s198, %s199
      %p211 = scmp.eq.s32.totalorder %s32, 1
      %p212 = por %p210, %p211
      %p214 = scmp.ne.s32.totalorder %s199, %s213
      %p215 = scmp.eq.s32.totalorder %s32, 0
      %p216 = por %p214, %p215
      %s218 = sadd.s32 %s217, 1
      %p221 = scmp.eq.s32.totalorder %s26, 1
      %p222 = scmp.ne.s32.totalorder %s217, %s219
      %p223 = scmp.eq.s32.totalorder %s26, 0
      %p224 = por %p222, %p223
      %p225 = scmp.ne.s32.totalorder %s217, %s219
      %p226 = scmp.eq.s32.totalorder %s31, 1
      %p227 = por %p225, %p226
      %p228 = scmp.ne.s32.totalorder %s219, %s220
      %p229 = scmp.eq.s32.totalorder %s31, 0
      %p230 = por %p228, %p229
      %p231 = scmp.ne.s32.totalorder %s219, %s220
      %p232 = scmp.eq.s32.totalorder %s32, 1
      %p233 = por %p231, %p232
      %p235 = scmp.ne.s32.totalorder %s220, %s234
      %p236 = scmp.eq.s32.totalorder %s32, 0
      %p237 = por %p235, %p236
      %s238 = ssub.s32 %s26, %s33
      %p239 = scmp.eq.s32.totalorder %s238, 0
      %s241 = sadd.s32 %s240, 1
      %s242 = scalar_select %p239, %s240, %s241
      %p245 = pneg %p239
      %p246 = scmp.eq.s32.totalorder %s26, 1
      %p247 = por %p245, %p246
      %p248 = scmp.ne.s32.totalorder %s240, %s243
      %p249 = scmp.eq.s32.totalorder %s26, 0
      %p250 = por %p248, %p249
      %p251 = scmp.ne.s32.totalorder %s240, %s243
      %p252 = scmp.eq.s32.totalorder %s31, 1
      %p253 = por %p251, %p252
      %p254 = scmp.ne.s32.totalorder %s243, %s244
      %p255 = scmp.eq.s32.totalorder %s31, 0
      %p256 = por %p254, %p255
      %p257 = scmp.ne.s32.totalorder %s243, %s244
      %p258 = scmp.eq.s32.totalorder %s32, 1
      %p259 = por %p257, %p258
      %p261 = scmp.ne.s32.totalorder %s244, %s260
      %p262 = scmp.eq.s32.totalorder %s32, 0
      %p263 = por %p261, %p262
      %p264 = scmp.le.s32.totalorder 1, %s26
      %p265 = scmp.lt.s32.totalorder %s26, 3
      %p266 = pnand %p264, %p265
      %p267 = pneg %p266
      // Predicated region
      $region9: #{tpu_custom_call.1} parent=5 // pred_check
        _
      $region10: #{tpu_custom_call.1} parent=5 // pred_check_branch
        %269 = sbr.rel (%p266) target = $region12
      $region11: #{tpu_custom_call.1} parent=5 // pred_region
        %s270 = ssub.s32 %s26, 1
        // Predicated region
        $region13: #{tpu_custom_call.1} parent=11 // pred_check
          %p271 = pneg %p125
        $region14: #{tpu_custom_call.1} parent=11 // pred_check_branch
          %273 = sbr.rel (%p271) target = $region16
        $region15: #{tpu_custom_call.1} parent=11 // pred_region
          %s275 = ssub.s32 512, 512
          %276 = vsyncadd [#allocation9], %s275
          %s277 = sshll.u32 [#allocation8], 4
          %s278 = int_to_ptr.vmem [resolvable:$true] %s277
          %283 = dma.hbm_to_vmem [thread:$0]  %s3, 512, %s278, [#allocation9], 64, 64, 4
        $region16: #{tpu_custom_call.1} parent=11 // pred_fallthru
          _
        // Predicated region
        $region17: #{tpu_custom_call.1} parent=11 // pred_check
          %p284 = pneg %p146
        $region18: #{tpu_custom_call.1} parent=11 // pred_check_branch
          %286 = sbr.rel (%p284) target = $region20
        $region19: #{tpu_custom_call.1} parent=11 // pred_region
          _
        $region20: #{tpu_custom_call.1} parent=11 // pred_fallthru
          _
        // Predicated region
        $region21: #{tpu_custom_call.1} parent=11 // pred_check
          %p287 = pneg %p167
        $region22: #{tpu_custom_call.1} parent=11 // pred_check_branch
          %289 = sbr.rel (%p287) target = $region24
        $region23: #{tpu_custom_call.1} parent=11 // pred_region
          %s291 = ssub.s32 1024, 1024
          %292 = vsyncadd [#allocation9], %s291
          %s293 = sshll.u32 [#allocation10], 4
          %s294 = int_to_ptr.vmem [resolvable:$true] %s293
          %299 = dma.hbm_to_vmem [thread:$0]  %s5, 1024, %s294, [#allocation9], 64, 64, 4
        $region24: #{tpu_custom_call.1} parent=11 // pred_fallthru
          _
        // Predicated region
        $region25: #{tpu_custom_call.1} parent=11 // pred_check
          %p300 = pneg %p188
        $region26: #{tpu_custom_call.1} parent=11 // pred_check_branch
          %302 = sbr.rel (%p300) target = $region28
        $region27: #{tpu_custom_call.1} parent=11 // pred_region
          _
        $region28: #{tpu_custom_call.1} parent=11 // pred_fallthru
          _
        // Predicated region
        $region29: #{tpu_custom_call.1} parent=11 // pred_check
          %p303 = pneg %p209
        $region30: #{tpu_custom_call.1} parent=11 // pred_check_branch
          %305 = sbr.rel (%p303) target = $region32
        $region31: #{tpu_custom_call.1} parent=11 // pred_region
          %s307 = ssub.s32 1024, 1024
          %308 = vsyncadd [#allocation12], %s307
          %s309 = sshll.u32 [#allocation11], 4
          %s310 = int_to_ptr.vmem [resolvable:$true] %s309
          %315 = dma.hbm_to_vmem [thread:$0]  %s7, 1024, %s310, [#allocation12], 64, 64, 4
        $region32: #{tpu_custom_call.1} parent=11 // pred_fallthru
          _
        // Predicated region
        $region33: #{tpu_custom_call.1} parent=11 // pred_check
          %p316 = pneg %p230
        $region34: #{tpu_custom_call.1} parent=11 // pred_check_branch
          %318 = sbr.rel (%p316) target = $region36
        $region35: #{tpu_custom_call.1} parent=11 // pred_region
          _
        $region36: #{tpu_custom_call.1} parent=11 // pred_fallthru
          _
      $region12: #{tpu_custom_call.1} parent=5 // pred_fallthru
        _
      %p319 = scmp.lt.s32.totalorder %s26, 2
      // Predicated region
      $region37: #{tpu_custom_call.1} parent=5 // pred_check
        %p320 = pneg %p319
      $region38: #{tpu_custom_call.1} parent=5 // pred_check_branch
        %322 = sbr.rel (%p320) target = $region40
      $region39: #{tpu_custom_call.1} parent=5 // pred_region
        // Predicated region
        $region41: #{tpu_custom_call.1} parent=39 // pred_check
          %p323 = pneg %p46
        $region42: #{tpu_custom_call.1} parent=39 // pred_check_branch
          %325 = sbr.rel (%p323) target = $region44
        $region43: #{tpu_custom_call.1} parent=39 // pred_region
          %s326 = sand.u32 %s36, 1
          %s327 = scalar_lea.sflag [#allocation3], %s326
          %s328 = sand.u32 %s36, 1
          %s329 = smul.addr %s328, 8
          %s330 = scalar_lea.vmem [#allocation2], %s329
          %s332 = ssub.s32 128, 128
          %333 = vsyncadd %s327, %s332
          %s334 = smul.addr %s26, 128
          %s335 = scalar_lea.hbm %s0, %s334
          %s337 = sshll.u32 %s330, 4
          %s338 = int_to_ptr.vmem [resolvable:$true] %s337
          %340 = dma.hbm_to_vmem [thread:$0]  %s335, 128, %s338, %s327
        $region44: #{tpu_custom_call.1} parent=39 // pred_fallthru
          _
        // Predicated region
        $region45: #{tpu_custom_call.1} parent=39 // pred_check
          %p341 = pneg %p72
        $region46: #{tpu_custom_call.1} parent=39 // pred_check_branch
          %343 = sbr.rel (%p341) target = $region48
        $region47: #{tpu_custom_call.1} parent=39 // pred_region
          %s344 = sand.u32 %s26, 1
          %s345 = scalar_lea.sflag [#allocation6], %s344
          %s346 = sand.u32 %s62, 1
          %s347 = smul.addr %s346, 8
          %s348 = scalar_lea.vmem [#allocation5], %s347
          %s350 = ssub.s32 128, 128
          %351 = vsyncadd %s345, %s350
          %s352 = smul.addr %s26, 128
          %s353 = scalar_lea.hbm %s1, %s352
          %s355 = sshll.u32 %s348, 4
          %s356 = int_to_ptr.vmem [resolvable:$true] %s355
          %358 = dma.hbm_to_vmem [thread:$0]  %s353, 128, %s356, %s345
        $region48: #{tpu_custom_call.1} parent=39 // pred_fallthru
          _
        // Predicated region
        $region49: #{tpu_custom_call.1} parent=39 // pred_check
          %p359 = pneg %p98
        $region50: #{tpu_custom_call.1} parent=39 // pred_check_branch
          %361 = sbr.rel (%p359) target = $region52
        $region51: #{tpu_custom_call.1} parent=39 // pred_region
          %s362 = sand.u32 %s26, 1
          %s363 = scalar_lea.sflag [#allocation6], %s362
          %s364 = sand.u32 %s88, 1
          %s365 = smul.addr %s364, 8
          %s366 = scalar_lea.vmem [#allocation7], %s365
          %s368 = ssub.s32 128, 128
          %369 = vsyncadd %s363, %s368
          %s370 = smul.addr %s26, 128
          %s371 = scalar_lea.hbm %s2, %s370
          %s373 = sshll.u32 %s366, 4
          %s374 = int_to_ptr.vmem [resolvable:$true] %s373
          %376 = dma.hbm_to_vmem [thread:$0]  %s371, 128, %s374, %s363
        $region52: #{tpu_custom_call.1} parent=39 // pred_fallthru
          _
      $region40: #{tpu_custom_call.1} parent=5 // pred_fallthru
        _
      %p377 = scmp.le.s32.totalorder 1, %s26
      %p378 = scmp.lt.s32.totalorder %s26, 3
      %p379 = pnand %p377, %p378
      %p380 = pneg %p379
      // Predicated region
      $region53: #{tpu_custom_call.1} parent=5 // pred_check
        _
      $region54: #{tpu_custom_call.1} parent=5 // pred_check_branch
        %382 = sbr.rel (%p379) target = $region56
      $region55: #{tpu_custom_call.1} parent=5 // pred_region
        %s383 = ssub.s32 %s26, 1
        %s384 = sand.u32 %s39, 1
        %s385 = scalar_lea.sflag [#allocation3], %s384
        %s386 = sand.u32 %s39, 1
        %s387 = smul.addr %s386, 8
        %s388 = scalar_lea.vmem [#allocation2], %s387
        // Predicated region
        $region57: #{tpu_custom_call.1} parent=55 // pred_check
          %p389 = pneg %p52
        $region58: #{tpu_custom_call.1} parent=55 // pred_check_branch
          %391 = sbr.rel (%p389) target = $region60
        $region59: #{tpu_custom_call.1} parent=55 // pred_region
          %392 = dma.done %s385, 128
        $region60: #{tpu_custom_call.1} parent=55 // pred_fallthru
          _
        %s393 = sand.u32 %s31, 1
        %s394 = scalar_lea.sflag [#allocation6], %s393
        %s395 = sand.u32 %s65, 1
        %s396 = smul.addr %s395, 8
        %s397 = scalar_lea.vmem [#allocation5], %s396
        // Predicated region
        $region61: #{tpu_custom_call.1} parent=55 // pred_check
          %p398 = pneg %p78
        $region62: #{tpu_custom_call.1} parent=55 // pred_check_branch
          %400 = sbr.rel (%p398) target = $region64
        $region63: #{tpu_custom_call.1} parent=55 // pred_region
          %401 = dma.done %s394, 128
        $region64: #{tpu_custom_call.1} parent=55 // pred_fallthru
          _
        %s402 = sand.u32 %s31, 1
        %s403 = scalar_lea.sflag [#allocation6], %s402
        %s404 = sand.u32 %s91, 1
        %s405 = smul.addr %s404, 8
        %s406 = scalar_lea.vmem [#allocation7], %s405
        // Predicated region
        $region65: #{tpu_custom_call.1} parent=55 // pred_check
          %p407 = pneg %p104
        $region66: #{tpu_custom_call.1} parent=55 // pred_check_branch
          %409 = sbr.rel (%p407) target = $region68
        $region67: #{tpu_custom_call.1} parent=55 // pred_region
          %410 = dma.done %s403, 128
        $region68: #{tpu_custom_call.1} parent=55 // pred_fallthru
          _
        // Predicated region
        $region69: #{tpu_custom_call.1} parent=55 // pred_check
          %p411 = pneg %p125
        $region70: #{tpu_custom_call.1} parent=55 // pred_check_branch
          %413 = sbr.rel (%p411) target = $region72
        $region71: #{tpu_custom_call.1} parent=55 // pred_region
          %414 = dma.done [#allocation9], 512
        $region72: #{tpu_custom_call.1} parent=55 // pred_fallthru
          _
        // Predicated region
        $region73: #{tpu_custom_call.1} parent=55 // pred_check
          %p415 = pneg %p167
        $region74: #{tpu_custom_call.1} parent=55 // pred_check_branch
          %417 = sbr.rel (%p415) target = $region76
        $region75: #{tpu_custom_call.1} parent=55 // pred_region
          %418 = dma.done [#allocation9], 1024
        $region76: #{tpu_custom_call.1} parent=55 // pred_fallthru
          _
        // Predicated region
        $region77: #{tpu_custom_call.1} parent=55 // pred_check
          %p419 = pneg %p209
        $region78: #{tpu_custom_call.1} parent=55 // pred_check_branch
          %421 = sbr.rel (%p419) target = $region80
        $region79: #{tpu_custom_call.1} parent=55 // pred_region
          %422 = dma.done [#allocation12], 1024
        $region80: #{tpu_custom_call.1} parent=55 // pred_fallthru
          _
        %s423 = sand.u32 %s39, 1
        %s424 = scalar_lea.sflag [#allocation3], %s423
        %s425 = sand.u32 %s39, 1
        %s426 = smul.addr %s425, 8
        %s427 = scalar_lea.vmem [#allocation2], %s426
        %p428 = pneg %p52
        %p429 = pneg %p49
        %s430 = sand.u32 %s31, 1
        %s431 = scalar_lea.sflag [#allocation6], %s430
        %s432 = sand.u32 %s65, 1
        %s433 = smul.addr %s432, 8
        %s434 = scalar_lea.vmem [#allocation5], %s433
        %p435 = pneg %p78
        %p436 = pneg %p75
        %s437 = sand.u32 %s31, 1
        %s438 = scalar_lea.sflag [#allocation6], %s437
        %s439 = sand.u32 %s91, 1
        %s440 = smul.addr %s439, 8
        %s441 = scalar_lea.vmem [#allocation7], %s440
        %p442 = pneg %p104
        %p443 = pneg %p101
        %p444 = pneg %p125
        %p445 = pneg %p122
        %p446 = pneg %p146
        %p447 = pneg %p143
        %p448 = pneg %p167
        %p449 = pneg %p164
        %p450 = pneg %p188
        %p451 = pneg %p185
        %p452 = pneg %p209
        %p453 = pneg %p206
        %p454 = pneg %p230
        %p455 = pneg %p227
        %p456 = pneg %p256
        %p457 = pneg %p253
        %s458 = sand.u32 %s243, 1
        %s459 = scalar_lea.sflag [#allocation4], %s458
        %s460 = sand.u32 %s243, 1
        %s461 = smul.addr %s460, 8
        %s462 = scalar_lea.vmem [#allocation13], %s461
        %v464 = vld [vmem:[%s397] sm:$0xff]
        %vm465 = vcmp.lt.f32.partialorder %v464, 0.9
        %v466 = vld [vmem:[%s406] sm:$0xff]
        %v467 = vsel %vm465, %v466, 0.0
        %v468 = vld [vmem:[%s388] sm:$0xff]
        %v469 = vpack.c.bf16 %v468, %v468
        %v470 = vpack.c.bf16 %v467, %v467
        %v471 = vld [vmem:[#allocation8] sm:$0xf]
        %v472 = vld [vmem:[#allocation8 + $0x4] sm:$0xf]
        %v473 = vld [vmem:[#allocation8 + $0x8] sm:$0xf]
        %v474 = vld [vmem:[#allocation8 + $0xc] sm:$0xf]
        %v475 = vld [vmem:[#allocation8 + $0x10] sm:$0xf]
        %v476 = vld [vmem:[#allocation8 + $0x14] sm:$0xf]
        %v477 = vld [vmem:[#allocation8 + $0x18] sm:$0xf]
        %v478 = vld [vmem:[#allocation8 + $0x1c] sm:$0xf]
        %v483 = vunpack.c.l.b16 %v475
        %v484 = vunpack.c.l.b16 %v476
        %v485 = vunpack.c.l.b16 %v477
        %v486 = vunpack.c.l.b16 %v478
        %v487 = vpack.c.b16 %v484, %v483
        %v488 = vpack.c.b16 %v486, %v485
        %vm491 = vcmask 261120
        %v493 = vsel %vm491, %v470, 0
        %495 = vmatprep.subr.bf16.mxu0 0
        %496 = vmatpush1.bf16.msra.mxu0 %v487
        %497 = vmatprep.subr.bf16.mxu0 0
        %498 = vmatpush1.bf16.msra.mxu0 %v488
        %499 = vmatprep.subr.bf16.mxu0 0
        %500 = vmatpush1.bf16.msra.mxu0 0
        %501 = vmatprep.subr.bf16.mxu0 0
        %502 = vmatpush1.bf16.msra.mxu0 0
        %503 = vmatprep.subr.bf16.mxu0 0
        %504 = vmatpush1.bf16.msra.mxu0 0
        %505 = vmatprep.subr.bf16.mxu0 0
        %506 = vmatpush1.bf16.msra.mxu0 0
        %507 = vmatprep.subr.bf16.mxu0 0
        %508 = vmatpush1.bf16.msra.mxu0 0
        %509 = vmatprep.subr.bf16.mxu0 0
        %510 = vmatpush1.bf16.msra.mxu0 0
        %511 = vmatprep.subr.bf16.mxu0 0
        %512 = vmatpush1.bf16.msra.mxu0 0
        %513 = vmatprep.subr.bf16.mxu0 0
        %514 = vmatpush1.bf16.msra.mxu0 0
        %515 = vmatprep.subr.bf16.mxu0 0
        %516 = vmatpush1.bf16.msra.mxu0 0
        %517 = vmatprep.subr.bf16.mxu0 0
        %518 = vmatpush1.bf16.msra.mxu0 0
        %519 = vmatprep.subr.bf16.mxu0 0
        %520 = vmatpush1.bf16.msra.mxu0 0
        %521 = vmatprep.subr.bf16.mxu0 0
        %522 = vmatpush1.bf16.msra.mxu0 0
        %523 = vmatprep.subr.bf16.mxu0 0
        %524 = vmatpush1.bf16.msra.mxu0 0
        %525 = vmatprep.subr.bf16.mxu0 0
        %526 = vmatpush1.bf16.msra.mxu0 0
        %527 = vmatprep.mubr.bf16.mxu0 0
        %528 = vmatmul.mubr.bf16.gmra.mrb[0].mxu0 %v493
        %v529 = vpop.f32.mrb[0].mxu0
        %v530 = vadd.f32 0.0, %v529
        %v531 = vpop.f32.mrb[0].mxu0
        %v532 = vpop.f32.mrb[0].mxu0
        %v533 = vpop.f32.mrb[0].mxu0
        %534 = vdwg.mxu0
        %v539 = vunpack.c.l.b16 %v471
        %v540 = vunpack.c.l.b16 %v472
        %v541 = vunpack.c.l.b16 %v473
        %v542 = vunpack.c.l.b16 %v474
        %v543 = vpack.c.b16 %v540, %v539
        %v544 = vpack.c.b16 %v542, %v541
        %v548 = vsel %vm491, %v469, 0
        %550 = vmatprep.subr.bf16.mxu0 0
        %551 = vmatpush1.bf16.msra.mxu0 %v543
        %552 = vmatprep.subr.bf16.mxu0 0
        %553 = vmatpush1.bf16.msra.mxu0 %v544
        %554 = vmatprep.subr.bf16.mxu0 0
        %555 = vmatpush1.bf16.msra.mxu0 0
        %556 = vmatprep.subr.bf16.mxu0 0
        %557 = vmatpush1.bf16.msra.mxu0 0
        %558 = vmatprep.subr.bf16.mxu0 0
        %559 = vmatpush1.bf16.msra.mxu0 0
        %560 = vmatprep.subr.bf16.mxu0 0
        %561 = vmatpush1.bf16.msra.mxu0 0
        %562 = vmatprep.subr.bf16.mxu0 0
        %563 = vmatpush1.bf16.msra.mxu0 0
        %564 = vmatprep.subr.bf16.mxu0 0
        %565 = vmatpush1.bf16.msra.mxu0 0
        %566 = vmatprep.subr.bf16.mxu0 0
        %567 = vmatpush1.bf16.msra.mxu0 0
        %568 = vmatprep.subr.bf16.mxu0 0
        %569 = vmatpush1.bf16.msra.mxu0 0
        %570 = vmatprep.subr.bf16.mxu0 0
        %571 = vmatpush1.bf16.msra.mxu0 0
        %572 = vmatprep.subr.bf16.mxu0 0
        %573 = vmatpush1.bf16.msra.mxu0 0
        %574 = vmatprep.subr.bf16.mxu0 0
        %575 = vmatpush1.bf16.msra.mxu0 0
        %576 = vmatprep.subr.bf16.mxu0 0
        %577 = vmatpush1.bf16.msra.mxu0 0
        %578 = vmatprep.subr.bf16.mxu0 0
        %579 = vmatpush1.bf16.msra.mxu0 0
        %580 = vmatprep.subr.bf16.mxu0 0
        %581 = vmatpush1.bf16.msra.mxu0 0
        %582 = vmatprep.mubr.bf16.mxu0 0
        %583 = vmatmul.mubr.bf16.gmra.mrb[0].mxu0 %v548
        %v584 = vpop.f32.mrb[0].mxu0
        %v585 = vadd.f32 %v530, %v584
        %v586 = vpop.f32.mrb[0].mxu0
        %v587 = vpop.f32.mrb[0].mxu0
        %v588 = vpop.f32.mrb[0].mxu0
        %589 = vdwg.mxu0
        %v590 = vld [vmem:[%s4] sm:$0x1]
        %v592 = vlaneseq
        %v593 = vshrl.u32 %v592, 7
        %v594 = vsub.s32 0, %v593
        %v595 = vrot.slane %v590, %v594
        %v597 = vadd.f32 %v585, %v595
        %v598 = vmax.f32 %v597, 0.0
        %v599 = vpack.c.bf16 %v598, %v598
        %v600 = vld [vmem:[#allocation10] sm:$0xf]
        %v601 = vld [vmem:[#allocation10 + $0x4] sm:$0xf]
        %v602 = vld [vmem:[#allocation10 + $0x8] sm:$0xf]
        %v603 = vld [vmem:[#allocation10 + $0xc] sm:$0xf]
        %v604 = vld [vmem:[#allocation10 + $0x10] sm:$0xf]
        %v605 = vld [vmem:[#allocation10 + $0x14] sm:$0xf]
        %v606 = vld [vmem:[#allocation10 + $0x18] sm:$0xf]
        %v607 = vld [vmem:[#allocation10 + $0x1c] sm:$0xf]
        %v608 = vld [vmem:[#allocation10 + $0x20] sm:$0xf]
        %v609 = vld [vmem:[#allocation10 + $0x24] sm:$0xf]
        %v610 = vld [vmem:[#allocation10 + $0x28] sm:$0xf]
        %v611 = vld [vmem:[#allocation10 + $0x2c] sm:$0xf]
        %v612 = vld [vmem:[#allocation10 + $0x30] sm:$0xf]
        %v613 = vld [vmem:[#allocation10 + $0x34] sm:$0xf]
        %v614 = vld [vmem:[#allocation10 + $0x38] sm:$0xf]
        %v615 = vld [vmem:[#allocation10 + $0x3c] sm:$0xf]
        %v616 = vld [vmem:[%s6] sm:$0x1]
        %v618 = vlaneseq
        %v619 = vshrl.u32 %v618, 7
        %v620 = vsub.s32 0, %v619
        %v621 = vrot.slane %v616, %v620
        %v639 = vunpack.c.l.b16 %v600
        %v640 = vunpack.c.l.b16 %v601
        %v641 = vunpack.c.l.b16 %v602
        %v642 = vunpack.c.l.b16 %v603
        %v643 = vunpack.c.l.b16 %v604
        %v644 = vunpack.c.l.b16 %v605
        %v645 = vunpack.c.l.b16 %v606
        %v646 = vunpack.c.l.b16 %v607
        %v647 = vunpack.c.l.b16 %v608
        %v648 = vunpack.c.l.b16 %v609
        %v649 = vunpack.c.l.b16 %v610
        %v650 = vunpack.c.l.b16 %v611
        %v651 = vunpack.c.l.b16 %v612
        %v652 = vunpack.c.l.b16 %v613
        %v653 = vunpack.c.l.b16 %v614
        %v654 = vunpack.c.l.b16 %v615
        %v655 = vpack.c.b16 %v640, %v639
        %v656 = vpack.c.b16 %v642, %v641
        %v657 = vpack.c.b16 %v644, %v643
        %v658 = vpack.c.b16 %v646, %v645
        %v659 = vpack.c.b16 %v648, %v647
        %v660 = vpack.c.b16 %v650, %v649
        %v661 = vpack.c.b16 %v652, %v651
        %v662 = vpack.c.b16 %v654, %v653
        %671 = vmatprep.subr.bf16.mxu0 0
        %672 = vmatpush1.bf16.msra.mxu0 %v655
        %673 = vmatprep.subr.bf16.mxu0 0
        %674 = vmatpush1.bf16.msra.mxu0 %v656
        %675 = vmatprep.subr.bf16.mxu0 0
        %676 = vmatpush1.bf16.msra.mxu0 %v657
        %677 = vmatprep.subr.bf16.mxu0 0
        %678 = vmatpush1.bf16.msra.mxu0 %v658
        %679 = vmatprep.subr.bf16.mxu0 0
        %680 = vmatpush1.bf16.msra.mxu0 %v659
        %681 = vmatprep.subr.bf16.mxu0 0
        %682 = vmatpush1.bf16.msra.mxu0 %v660
        %683 = vmatprep.subr.bf16.mxu0 0
        %684 = vmatpush1.bf16.msra.mxu0 %v661
        %685 = vmatprep.subr.bf16.mxu0 0
        %686 = vmatpush1.bf16.msra.mxu0 %v662
        %687 = vmatprep.subr.bf16.mxu0 0
        %688 = vmatpush1.bf16.msra.mxu0 0
        %689 = vmatprep.subr.bf16.mxu0 0
        %690 = vmatpush1.bf16.msra.mxu0 0
        %691 = vmatprep.subr.bf16.mxu0 0
        %692 = vmatpush1.bf16.msra.mxu0 0
        %693 = vmatprep.subr.bf16.mxu0 0
        %694 = vmatpush1.bf16.msra.mxu0 0
        %695 = vmatprep.subr.bf16.mxu0 0
        %696 = vmatpush1.bf16.msra.mxu0 0
        %697 = vmatprep.subr.bf16.mxu0 0
        %698 = vmatpush1.bf16.msra.mxu0 0
        %699 = vmatprep.subr.bf16.mxu0 0
        %700 = vmatpush1.bf16.msra.mxu0 0
        %701 = vmatprep.subr.bf16.mxu0 0
        %702 = vmatpush1.bf16.msra.mxu0 0
        %703 = vmatprep.mubr.bf16.mxu0 0
        %704 = vmatmul.mubr.bf16.gmra.mrb[0].mxu0 %v599
        %v705 = vpop.f32.mrb[0].mxu0
        %v706 = vadd.f32 %v621, %v705
        %v707 = vpop.f32.mrb[0].mxu0
        %v708 = vpop.f32.mrb[0].mxu0
        %v709 = vpop.f32.mrb[0].mxu0
        %710 = vdwg.mxu0
        %v711 = vmax.f32 %v706, 0.0
        %v712 = vpack.c.bf16 %v711, %v711
        %v713 = vld [vmem:[#allocation11] sm:$0xf]
        %v714 = vld [vmem:[#allocation11 + $0x4] sm:$0xf]
        %v715 = vld [vmem:[#allocation11 + $0x8] sm:$0xf]
        %v716 = vld [vmem:[#allocation11 + $0xc] sm:$0xf]
        %v717 = vld [vmem:[#allocation11 + $0x10] sm:$0xf]
        %v718 = vld [vmem:[#allocation11 + $0x14] sm:$0xf]
        %v719 = vld [vmem:[#allocation11 + $0x18] sm:$0xf]
        %v720 = vld [vmem:[#allocation11 + $0x1c] sm:$0xf]
        %v721 = vld [vmem:[#allocation11 + $0x20] sm:$0xf]
        %v722 = vld [vmem:[#allocation11 + $0x24] sm:$0xf]
        %v723 = vld [vmem:[#allocation11 + $0x28] sm:$0xf]
        %v724 = vld [vmem:[#allocation11 + $0x2c] sm:$0xf]
        %v725 = vld [vmem:[#allocation11 + $0x30] sm:$0xf]
        %v726 = vld [vmem:[#allocation11 + $0x34] sm:$0xf]
        %v727 = vld [vmem:[#allocation11 + $0x38] sm:$0xf]
        %v728 = vld [vmem:[#allocation11 + $0x3c] sm:$0xf]
        %v729 = vld [vmem:[%s8] sm:$0x1]
        %v731 = vlaneseq
        %v732 = vshrl.u32 %v731, 7
        %v733 = vsub.s32 0, %v732
        %v734 = vrot.slane %v729, %v733
        %v752 = vunpack.c.l.b16 %v713
        %v753 = vunpack.c.l.b16 %v714
        %v754 = vunpack.c.l.b16 %v715
        %v755 = vunpack.c.l.b16 %v716
        %v756 = vunpack.c.l.b16 %v717
        %v757 = vunpack.c.l.b16 %v718
        %v758 = vunpack.c.l.b16 %v719
        %v759 = vunpack.c.l.b16 %v720
        %v760 = vunpack.c.l.b16 %v721
        %v761 = vunpack.c.l.b16 %v722
        %v762 = vunpack.c.l.b16 %v723
        %v763 = vunpack.c.l.b16 %v724
        %v764 = vunpack.c.l.b16 %v725
        %v765 = vunpack.c.l.b16 %v726
        %v766 = vunpack.c.l.b16 %v727
        %v767 = vunpack.c.l.b16 %v728
        %v768 = vpack.c.b16 %v753, %v752
        %v769 = vpack.c.b16 %v755, %v754
        %v770 = vpack.c.b16 %v757, %v756
        %v771 = vpack.c.b16 %v759, %v758
        %v772 = vpack.c.b16 %v761, %v760
        %v773 = vpack.c.b16 %v763, %v762
        %v774 = vpack.c.b16 %v765, %v764
        %v775 = vpack.c.b16 %v767, %v766
        %784 = vmatprep.subr.bf16.mxu0 0
        %785 = vmatpush1.bf16.msra.mxu0 %v768
        %786 = vmatprep.subr.bf16.mxu0 0
        %787 = vmatpush1.bf16.msra.mxu0 %v769
        %788 = vmatprep.subr.bf16.mxu0 0
        %789 = vmatpush1.bf16.msra.mxu0 %v770
        %790 = vmatprep.subr.bf16.mxu0 0
        %791 = vmatpush1.bf16.msra.mxu0 %v771
        %792 = vmatprep.subr.bf16.mxu0 0
        %793 = vmatpush1.bf16.msra.mxu0 %v772
        %794 = vmatprep.subr.bf16.mxu0 0
        %795 = vmatpush1.bf16.msra.mxu0 %v773
        %796 = vmatprep.subr.bf16.mxu0 0
        %797 = vmatpush1.bf16.msra.mxu0 %v774
        %798 = vmatprep.subr.bf16.mxu0 0
        %799 = vmatpush1.bf16.msra.mxu0 %v775
        %800 = vmatprep.subr.bf16.mxu0 0
        %801 = vmatpush1.bf16.msra.mxu0 0
        %802 = vmatprep.subr.bf16.mxu0 0
        %803 = vmatpush1.bf16.msra.mxu0 0
        %804 = vmatprep.subr.bf16.mxu0 0
        %805 = vmatpush1.bf16.msra.mxu0 0
        %806 = vmatprep.subr.bf16.mxu0 0
        %807 = vmatpush1.bf16.msra.mxu0 0
        %808 = vmatprep.subr.bf16.mxu0 0
        %809 = vmatpush1.bf16.msra.mxu0 0
        %810 = vmatprep.subr.bf16.mxu0 0
        %811 = vmatpush1.bf16.msra.mxu0 0
        %812 = vmatprep.subr.bf16.mxu0 0
        %813 = vmatpush1.bf16.msra.mxu0 0
        %814 = vmatprep.subr.bf16.mxu0 0
        %815 = vmatpush1.bf16.msra.mxu0 0
        %816 = vmatprep.mubr.bf16.mxu0 0
        %817 = vmatmul.mubr.bf16.gmra.mrb[0].mxu0 %v712
        %v818 = vpop.f32.mrb[0].mxu0
        %v819 = vadd.f32 %v734, %v818
        %v820 = vpop.f32.mrb[0].mxu0
        %v821 = vpop.f32.mrb[0].mxu0
        %v822 = vpop.f32.mrb[0].mxu0
        %823 = vdwg.mxu0
        %v824 = vxor.u32 %v819, 2147483648
        %v825 = vmul.f32 %v824, 1.442695
        %v826 = vpow.pop %v825
        %v827 = vadd.f32 %v826, 1.0
        %v828 = vrcp.pop %v827
        %v829 = vmul.f32 1.0, %v828
        %830 = vst.msk [vmem:[%s462] sm:$0xff] %vm491, %v829
        %s831 = sand.u32 %s243, 1
        %s832 = scalar_lea.sflag [#allocation4], %s831
        %s833 = sand.u32 %s243, 1
        %s834 = smul.addr %s833, 8
        %s835 = scalar_lea.vmem [#allocation13], %s834
        // Predicated region
        $region81: #{tpu_custom_call.1} parent=55 // pred_check
          %p836 = pneg %p253
        $region82: #{tpu_custom_call.1} parent=55 // pred_check_branch
          %838 = sbr.rel (%p836) target = $region84
        $region83: #{tpu_custom_call.1} parent=55 // pred_region
          %s840 = ssub.s32 128, 128
          %841 = vsyncadd %s832, %s840
          %s842 = smul.addr %s31, 128
          %s843 = scalar_lea.hbm %s9, %s842
          %s845 = sshll.u32 %s835, 4
          %s846 = int_to_ptr.vmem [resolvable:$true] %s845
          %848 = dma.vmem_to_hbm [thread:$0]  %s846, 128, %s843, %s832
        $region84: #{tpu_custom_call.1} parent=55 // pred_fallthru
          _
      $region56: #{tpu_custom_call.1} parent=5 // pred_fallthru
        _
      %p849 = scmp.le.s32.totalorder 2, %s26
      // Predicated region
      $region85: #{tpu_custom_call.1} parent=5 // pred_check
        %p850 = pneg %p849
      $region86: #{tpu_custom_call.1} parent=5 // pred_check_branch
        %852 = sbr.rel (%p850) target = $region88
      $region87: #{tpu_custom_call.1} parent=5 // pred_region
        %s853 = ssub.s32 %s26, 2
        // Predicated region
        $region89: #{tpu_custom_call.1} parent=87 // pred_check
          %p854 = pneg %p259
        $region90: #{tpu_custom_call.1} parent=87 // pred_check_branch
          %856 = sbr.rel (%p854) target = $region92
        $region91: #{tpu_custom_call.1} parent=87 // pred_region
          %s857 = sand.u32 %s244, 1
          %s858 = scalar_lea.sflag [#allocation4], %s857
          %s859 = sand.u32 %s244, 1
          %s860 = smul.addr %s859, 8
          %s861 = scalar_lea.vmem [#allocation13], %s860
          %862 = dma.done %s858, 128
        $region92: #{tpu_custom_call.1} parent=87 // pred_fallthru
          _
      $region88: #{tpu_custom_call.1} parent=5 // pred_fallthru
        _
    $region6: #{tpu_custom_call.1} parent=1 // loop_footer
      %s30 = sadd.s32 1, %s26
    $region7: #{tpu_custom_call.1} parent=1 // loop_footer_branch
      %25 = sbr.rel target = $region3
    $region8: #{tpu_custom_call.1} parent=1 // loop_exit
      _
    %863 = vsyncpa [#allocation3], 1
    %s864 = scalar_lea.sflag [#allocation3], 1
    %865 = vsyncpa %s864, 1
    %866 = vsyncpa [#allocation6], 1
    %s867 = scalar_lea.sflag [#allocation6], 1
    %868 = vsyncpa %s867, 1
    %869 = vsyncpa [#allocation9], 1
    %870 = vsyncpa [#allocation12], 1
    %871 = vsyncpa [#allocation4], 1
    %s872 = scalar_lea.sflag [#allocation4], 1
    %873 = vsyncpa %s872, 1

</llo_original>
